<compile_context>
chip_gen: v6e
topology: v6e:2x2x1
jax: 0.10.0
libtpu: 0.0.40
codegen_flags: <defaults>
</compile_context>

<pallas_src>
import jax
import jax.numpy as jnp
from jax.experimental import pallas as pl
from jax.experimental.pallas import tpu as pltpu


_ROW_ALIGN = 16    # bf16 sublane pack
_LANE = 128        # lane width


def _round_up(x, m):
    return (x + m - 1) // m * m


def _device_kind():
    # NOTE: runs at Python/trace time; under AOT/mock compilation this may
    # fall back to the generic branch (2048-row tiles), which is always safe.
    try:
        return jax.devices()[0].device_kind.lower()
    except Exception:
        return ""


def _max_tile_rows(kind):
    """Generation-tuned cap for the M (rows) tile of the im2col matmul.

    Double-buffered working set at the largest K used here (Kp<=384, bf16
    patches, bf16 output, resident bf16 weights):
        TM=2048: ~4.2 MiB   (v5e, 16 MiB default scoped VMEM)
        TM=4096: ~8.5 MiB   (v7x, 32 MiB scoped / 64 MiB physical)
        TM=8192: ~17  MiB   (v6e, 32 MiB scoped / 128 MiB physical)
    """
    if any(t in kind for t in ("v5 lite", "v5lite", "v5e")):
        return 2048
    if "v6" in kind:
        return 8192
    if "v7" in kind:
        return 4096
    return 2048


def _num_tensorcores(kind):
    # v7x has 2 TensorCores per chip; earlier inference parts have 1.
    return 2 if "v7" in kind else 1


def _choose_m_tiling(M, kind):
    """Pick (TM, Mp): row-tile and padded row count for the M axis."""
    cap = _max_tile_rows(kind)
    m_aligned = _round_up(M, _ROW_ALIGN)
    tm = min(cap, m_aligned)
    if _num_tensorcores(kind) >= 2 and m_aligned > _ROW_ALIGN:
        # Guarantee >=2 grid steps so the "parallel" M axis can be sharded
        # across both TensorCores (otherwise one TC idles on medium images).
        tm = min(tm, _round_up(pl.cdiv(m_aligned, 2), _ROW_ALIGN))
    mp = _round_up(M, tm)
    return tm, mp


def _conv_mm_kernel(p_ref, w_ref, b_ref, o_ref):
    """Fused im2col-matmul + bias + ReLU for one M tile.

    p_ref: (TM, Kp)   bf16 im2col patches tile      (VMEM)
    w_ref: (Kp, Cp)   bf16 reshaped conv weight     (VMEM, resident)
    b_ref: (1, Cp)    f32 bias                      (VMEM, resident)
    o_ref: (TM, Cp)   bf16 output tile              (VMEM)
    """
    acc = jnp.dot(p_ref[...], w_ref[...], preferred_element_type=jnp.float32)
    acc = acc + b_ref[...]
    o_ref[...] = jnp.maximum(acc, 0.0).astype(o_ref.dtype)


def conv3x3_s2_relu(x_nhwc, w, b):
    """3x3 conv, stride 2, padding 1, bias, ReLU.

    x_nhwc: (N, H, W, Cin) bf16 activations.
    w:      (3, 3, Cin, Cout) f32 weights, b: (Cout,) f32 bias.
    Returns (N, Ho, Wo, Cout) bf16.

    Patch extraction (pure data movement, in bf16) is plain-JAX glue that
    fuses under jit; the matmul / bias / ReLU hot path runs in the Pallas
    kernel above, tiled over M = N*Ho*Wo with lane-dense (128-wide) K and
    output dims.
    """
    N, H, W, Cin = x_nhwc.shape
    Cout = w.shape[-1]
    Ho, Wo = (H + 1) // 2, (W + 1) // 2
    M = N * Ho * Wo
    K = 9 * Cin

    # im2col in bf16: K axis ordered (kh, kw, cin); weight reshaped to match.
    xp = jnp.pad(x_nhwc, ((0, 0), (1, 1), (1, 1), (0, 0)))
    cols = []
    for kh in range(3):
        for kw in range(3):
            cols.append(xp[:, kh:kh + 2 * Ho:2, kw:kw + 2 * Wo:2, :])
    patches = jnp.concatenate(cols, axis=-1).reshape(M, K)

    Kp = _round_up(K, _LANE)      # lane-dense contraction dim (unmasked vld,
                                  # weight sublane dim a multiple of 16)
    Cp = _round_up(Cout, _LANE)   # lane-dense output (unmasked vst)
    kind = _device_kind()
    TM, Mp = _choose_m_tiling(M, kind)

    # Zero-padding fuses with the im2col glue under jit.
    patches = jnp.pad(patches, ((0, Mp - M), (0, Kp - K)))           # bf16
    w2 = jnp.pad(w.reshape(K, Cout).astype(jnp.bfloat16),
                 ((0, Kp - K), (0, Cp - Cout)))
    b2 = jnp.pad(b.reshape(1, Cout).astype(jnp.float32),
                 ((0, 0), (0, Cp - Cout)))

    grid = (Mp // TM,)
    out = pl.pallas_call(
        _conv_mm_kernel,
        out_shape=jax.ShapeDtypeStruct((Mp, Cp), jnp.bfloat16),
        grid=grid,
        in_specs=[
            pl.BlockSpec((TM, Kp), lambda m: (m, 0)),   # patches: tiled over M
            # weights/bias are tiny & constant-indexed; single-buffering them
            # (pipeline_mode=pl.Buffered(1)) is a minor hygiene win we skip
            # for portability.
            pl.BlockSpec((Kp, Cp), lambda m: (0, 0)),   # weight: resident
            pl.BlockSpec((1, Cp), lambda m: (0, 0)),    # bias:   resident
        ],
        out_specs=pl.BlockSpec((TM, Cp), lambda m: (m, 0)),
        compiler_params=pltpu.CompilerParams(
            dimension_semantics=("parallel",)),
    )(patches, w2, b2)

    # Padded rows compute ReLU(bias) garbage; slice them (and padded lanes) off.
    return out[:M, :Cout].reshape(N, Ho, Wo, Cout)


class Backbone:
    """JAX/Pallas analogue of the PyTorch `Backbone` wrapper.

    Builds a small deterministic multi-stage CNN (stand-in for the timm
    features_only model) and returns the feature maps at `out_indices`.
    `train_backbone=False` (frozen params) is the natural state here since
    parameters are plain arrays with no grad tracking.
    """

    # TODO(synk): `create_model(name, ...)` can build arbitrary timm
    # architectures with pretrained weights; only a representative 3-stage
    # conv backbone is realised here.
    _WIDTHS = (16, 32, 64)

    def __init__(self, name, pretrained, out_indices, train_backbone, others,
                 in_chans=4, seed=0):
        del name, pretrained, others  # synthetic backbone, no checkpoint load
        self.train_backbone = train_backbone
        self.out_indices = list(out_indices)
        key = jax.random.PRNGKey(seed)
        self.params = []
        cin = in_chans
        for cout in self._WIDTHS:
            key, kw, kb = jax.random.split(key, 3)
            fan_in = 9 * cin
            w = jax.random.normal(kw, (3, 3, cin, cout), jnp.float32)
            w = w * jnp.sqrt(2.0 / fan_in)
            b = 0.01 * jax.random.normal(kb, (cout,), jnp.float32)
            self.params.append((w, b))
            cin = cout
        # jit the whole forward: fuses im2col/pad/cast glue between the
        # per-stage pallas_calls and removes per-op dispatch overhead.
        self._forward = jax.jit(self._forward_impl)

    def _forward_impl(self, params, x_nchw):
        # NCHW (PyTorch convention) -> NHWC; cast to bf16 once up front so all
        # inter-stage activations and im2col glue stay bf16.
        x = jnp.transpose(x_nchw, (0, 2, 3, 1)).astype(jnp.bfloat16)
        feats_nhwc = []
        for (w, b) in params:
            x = conv3x3_s2_relu(x, w, b)
            feats_nhwc.append(x)
        # features_only contract: list of tensors at the requested indices.
        # Only requested stages are transposed back to NCHW (in bf16, cheap)
        # and cast to f32 for PyTorch dtype parity.
        return [jnp.transpose(feats_nhwc[i], (0, 3, 1, 2)).astype(jnp.float32)
                for i in self.out_indices]

    def __call__(self, x_nchw):
        return self._forward(self.params, x_nchw)

    @property
    def feature_info(self):
        return [{"index": i,
                 "num_chs": self._WIDTHS[i],
                 "reduction": 2 ** (i + 1)} for i in self.out_indices]


if __name__ == "__main__":
    key = jax.random.PRNGKey(0)
    x = jax.random.normal(key, (2, 4, 16, 16), jnp.float32)  # NCHW, like PyTorch

    backbone = Backbone(name="resnet_tiny_synth", pretrained=False,
                        out_indices=[1, 2], train_backbone=False, others={})
    feats = backbone(x)
    for f in feats:
        jax.block_until_ready(f)

    expected_shapes = [(2, 32, 4, 4), (2, 64, 2, 2)]
    assert [tuple(f.shape) for f in feats] == expected_shapes, \
        [tuple(f.shape) for f in feats]
    assert all(f.dtype == jnp.float32 for f in feats)
    assert all(bool(jnp.all(f >= 0.0)) for f in feats)  # ReLU outputs
    print("KERNEL_OK")
</pallas_src>

<mosaic_0001>
module attributes {stable_mosaic.version = 11 : i64} {
  func.func @_conv_mm_kernel(%arg0: i32, %arg1: memref<128x128xbf16, #tpu.memory_space<vmem>>, %arg2: memref<128x128xbf16, #tpu.memory_space<vmem>>, %arg3: memref<1x128xf32, #tpu.memory_space<vmem>>, %arg4: memref<128x128xbf16, #tpu.memory_space<vmem>>) attributes {dimension_semantics = [#tpu.dimension_semantics<parallel>], iteration_bounds = array<i64: 1>, scalar_prefetch = 0 : i64, scratch_operands = 0 : i64, tpu.core_type = #tpu.core_type<tc>, window_params = [{transform_indices = @transform_0, window_bounds = array<i64: 128, 128>}, {pipeline_mode = #tpu.pipeline_mode<synchronous>, transform_indices = @transform_1, window_bounds = array<i64: 128, 128>}, {pipeline_mode = #tpu.pipeline_mode<synchronous>, transform_indices = @transform_2, window_bounds = array<i64: 1, 128>}, {transform_indices = @transform_3, window_bounds = array<i64: 128, 128>}]} {
    %c0 = arith.constant 0 : index
    %c0_0 = arith.constant 0 : index
    %0 = vector.load %arg1[%c0, %c0_0] : memref<128x128xbf16, #tpu.memory_space<vmem>>, vector<128x128xbf16>
    %c0_1 = arith.constant 0 : index
    %c0_2 = arith.constant 0 : index
    %1 = vector.load %arg2[%c0_1, %c0_2] : memref<128x128xbf16, #tpu.memory_space<vmem>>, vector<128x128xbf16>
    %cst = arith.constant dense<0.000000e+00> : vector<128x128xf32>
    %2 = tpu.matmul %0, %1, %cst {dimension_numbers = #tpu.dot_dimension_numbers<[1], [0], [0], [1], [0, 0, 1, 1], [], []>} : vector<128x128xbf16>, vector<128x128xbf16>, vector<128x128xf32> -> vector<128x128xf32>
    %c0_3 = arith.constant 0 : index
    %c0_4 = arith.constant 0 : index
    %3 = vector.load %arg3[%c0_3, %c0_4] : memref<1x128xf32, #tpu.memory_space<vmem>>, vector<1x128xf32>
    %4 = vector.broadcast %3 : vector<1x128xf32> to vector<128x128xf32>
    %5 = arith.addf %2, %4 : vector<128x128xf32>
    %cst_5 = arith.constant 0.000000e+00 : f32
    %6 = vector.broadcast %cst_5 : f32 to vector<128x128xf32>
    %7 = arith.maximumf %5, %6 : vector<128x128xf32>
    %8 = arith.truncf %7 : vector<128x128xf32> to vector<128x128xbf16>
    %c0_6 = arith.constant 0 : index
    %c0_7 = arith.constant 0 : index
    %9 = vector.load %arg4[%c0_6, %c0_7] : memref<128x128xbf16, #tpu.memory_space<vmem>>, vector<128x128xbf16>
    tpu.vector_store %arg4[%c0_6, %c0_7], %8 {strides = array<i32>} : memref<128x128xbf16, #tpu.memory_space<vmem>>, vector<128x128xbf16>,
    return
  }
  func.func @transform_0(%arg0: i32) -> (i32, i32) {
    %c0_i32 = arith.constant 0 : i32
    %c0_i32_0 = arith.constant 0 : i32
    return %arg0, %c0_i32 : i32, i32
  }
  func.func @transform_1(%arg0: i32) -> (i32, i32) {
    %c0_i32 = arith.constant 0 : i32
    %c0_i32_0 = arith.constant 0 : i32
    %c0_i32_1 = arith.constant 0 : i32
    return %c0_i32, %c0_i32_0 : i32, i32
  }
  func.func @transform_2(%arg0: i32) -> (i32, i32) {
    %c0_i32 = arith.constant 0 : i32
    %c0_i32_0 = arith.constant 0 : i32
    %c0_i32_1 = arith.constant 0 : i32
    return %c0_i32, %c0_i32_0 : i32, i32
  }
  func.func @transform_3(%arg0: i32) -> (i32, i32) {
    %c0_i32 = arith.constant 0 : i32
    %c0_i32_0 = arith.constant 0 : i32
    return %arg0, %c0_i32 : i32, i32
  }
}

module attributes {stable_mosaic.version = 11 : i64} {
  func.func @_conv_mm_kernel(%arg0: i32, %arg1: memref<32x256xbf16, #tpu.memory_space<vmem>>, %arg2: memref<256x128xbf16, #tpu.memory_space<vmem>>, %arg3: memref<1x128xf32, #tpu.memory_space<vmem>>, %arg4: memref<32x128xbf16, #tpu.memory_space<vmem>>) attributes {dimension_semantics = [#tpu.dimension_semantics<parallel>], iteration_bounds = array<i64: 1>, scalar_prefetch = 0 : i64, scratch_operands = 0 : i64, tpu.core_type = #tpu.core_type<tc>, window_params = [{transform_indices = @transform_0, window_bounds = array<i64: 32, 256>}, {pipeline_mode = #tpu.pipeline_mode<synchronous>, transform_indices = @transform_1, window_bounds = array<i64: 256, 128>}, {pipeline_mode = #tpu.pipeline_mode<synchronous>, transform_indices = @transform_2, window_bounds = array<i64: 1, 128>}, {transform_indices = @transform_3, window_bounds = array<i64: 32, 128>}]} {
    %c0 = arith.constant 0 : index
    %c0_0 = arith.constant 0 : index
    %0 = vector.load %arg1[%c0, %c0_0] : memref<32x256xbf16, #tpu.memory_space<vmem>>, vector<32x256xbf16>
    %c0_1 = arith.constant 0 : index
    %c0_2 = arith.constant 0 : index
    %1 = vector.load %arg2[%c0_1, %c0_2] : memref<256x128xbf16, #tpu.memory_space<vmem>>, vector<256x128xbf16>
    %cst = arith.constant dense<0.000000e+00> : vector<32x128xf32>
    %2 = tpu.matmul %0, %1, %cst {dimension_numbers = #tpu.dot_dimension_numbers<[1], [0], [0], [1], [0, 0, 1, 1], [], []>} : vector<32x256xbf16>, vector<256x128xbf16>, vector<32x128xf32> -> vector<32x128xf32>
    %c0_3 = arith.constant 0 : index
    %c0_4 = arith.constant 0 : index
    %3 = vector.load %arg3[%c0_3, %c0_4] : memref<1x128xf32, #tpu.memory_space<vmem>>, vector<1x128xf32>
    %4 = vector.broadcast %3 : vector<1x128xf32> to vector<32x128xf32>
    %5 = arith.addf %2, %4 : vector<32x128xf32>
    %cst_5 = arith.constant 0.000000e+00 : f32
    %6 = vector.broadcast %cst_5 : f32 to vector<32x128xf32>
    %7 = arith.maximumf %5, %6 : vector<32x128xf32>
    %8 = arith.truncf %7 : vector<32x128xf32> to vector<32x128xbf16>
    %c0_6 = arith.constant 0 : index
    %c0_7 = arith.constant 0 : index
    %9 = vector.load %arg4[%c0_6, %c0_7] : memref<32x128xbf16, #tpu.memory_space<vmem>>, vector<32x128xbf16>
    tpu.vector_store %arg4[%c0_6, %c0_7], %8 {strides = array<i32>} : memref<32x128xbf16, #tpu.memory_space<vmem>>, vector<32x128xbf16>,
    return
  }
  func.func @transform_0(%arg0: i32) -> (i32, i32) {
    %c0_i32 = arith.constant 0 : i32
    %c0_i32_0 = arith.constant 0 : i32
    return %arg0, %c0_i32 : i32, i32
  }
  func.func @transform_1(%arg0: i32) -> (i32, i32) {
    %c0_i32 = arith.constant 0 : i32
    %c0_i32_0 = arith.constant 0 : i32
    %c0_i32_1 = arith.constant 0 : i32
    return %c0_i32, %c0_i32_0 : i32, i32
  }
  func.func @transform_2(%arg0: i32) -> (i32, i32) {
    %c0_i32 = arith.constant 0 : i32
    %c0_i32_0 = arith.constant 0 : i32
    %c0_i32_1 = arith.constant 0 : i32
    return %c0_i32, %c0_i32_0 : i32, i32
  }
  func.func @transform_3(%arg0: i32) -> (i32, i32) {
    %c0_i32 = arith.constant 0 : i32
    %c0_i32_0 = arith.constant 0 : i32
    return %arg0, %c0_i32 : i32, i32
  }
}

module attributes {stable_mosaic.version = 11 : i64} {
  func.func @_conv_mm_kernel(%arg0: i32, %arg1: memref<16x384xbf16, #tpu.memory_space<vmem>>, %arg2: memref<384x128xbf16, #tpu.memory_space<vmem>>, %arg3: memref<1x128xf32, #tpu.memory_space<vmem>>, %arg4: memref<16x128xbf16, #tpu.memory_space<vmem>>) attributes {dimension_semantics = [#tpu.dimension_semantics<parallel>], iteration_bounds = array<i64: 1>, scalar_prefetch = 0 : i64, scratch_operands = 0 : i64, tpu.core_type = #tpu.core_type<tc>, window_params = [{transform_indices = @transform_0, window_bounds = array<i64: 16, 384>}, {pipeline_mode = #tpu.pipeline_mode<synchronous>, transform_indices = @transform_1, window_bounds = array<i64: 384, 128>}, {pipeline_mode = #tpu.pipeline_mode<synchronous>, transform_indices = @transform_2, window_bounds = array<i64: 1, 128>}, {transform_indices = @transform_3, window_bounds = array<i64: 16, 128>}]} {
    %c0 = arith.constant 0 : index
    %c0_0 = arith.constant 0 : index
    %0 = vector.load %arg1[%c0, %c0_0] : memref<16x384xbf16, #tpu.memory_space<vmem>>, vector<16x384xbf16>
    %c0_1 = arith.constant 0 : index
    %c0_2 = arith.constant 0 : index
    %1 = vector.load %arg2[%c0_1, %c0_2] : memref<384x128xbf16, #tpu.memory_space<vmem>>, vector<384x128xbf16>
    %cst = arith.constant dense<0.000000e+00> : vector<16x128xf32>
    %2 = tpu.matmul %0, %1, %cst {dimension_numbers = #tpu.dot_dimension_numbers<[1], [0], [0], [1], [0, 0, 1, 1], [], []>} : vector<16x384xbf16>, vector<384x128xbf16>, vector<16x128xf32> -> vector<16x128xf32>
    %c0_3 = arith.constant 0 : index
    %c0_4 = arith.constant 0 : index
    %3 = vector.load %arg3[%c0_3, %c0_4] : memref<1x128xf32, #tpu.memory_space<vmem>>, vector<1x128xf32>
    %4 = vector.broadcast %3 : vector<1x128xf32> to vector<16x128xf32>
    %5 = arith.addf %2, %4 : vector<16x128xf32>
    %cst_5 = arith.constant 0.000000e+00 : f32
    %6 = vector.broadcast %cst_5 : f32 to vector<16x128xf32>
    %7 = arith.maximumf %5, %6 : vector<16x128xf32>
    %8 = arith.truncf %7 : vector<16x128xf32> to vector<16x128xbf16>
    %c0_6 = arith.constant 0 : index
    %c0_7 = arith.constant 0 : index
    %9 = vector.load %arg4[%c0_6, %c0_7] : memref<16x128xbf16, #tpu.memory_space<vmem>>, vector<16x128xbf16>
    tpu.vector_store %arg4[%c0_6, %c0_7], %8 {strides = array<i32>} : memref<16x128xbf16, #tpu.memory_space<vmem>>, vector<16x128xbf16>,
    return
  }
  func.func @transform_0(%arg0: i32) -> (i32, i32) {
    %c0_i32 = arith.constant 0 : i32
    %c0_i32_0 = arith.constant 0 : i32
    return %arg0, %c0_i32 : i32, i32
  }
  func.func @transform_1(%arg0: i32) -> (i32, i32) {
    %c0_i32 = arith.constant 0 : i32
    %c0_i32_0 = arith.constant 0 : i32
    %c0_i32_1 = arith.constant 0 : i32
    return %c0_i32, %c0_i32_0 : i32, i32
  }
  func.func @transform_2(%arg0: i32) -> (i32, i32) {
    %c0_i32 = arith.constant 0 : i32
    %c0_i32_0 = arith.constant 0 : i32
    %c0_i32_1 = arith.constant 0 : i32
    return %c0_i32, %c0_i32_0 : i32, i32
  }
  func.func @transform_3(%arg0: i32) -> (i32, i32) {
    %c0_i32 = arith.constant 0 : i32
    %c0_i32_0 = arith.constant 0 : i32
    return %arg0, %c0_i32 : i32, i32
  }
}

</mosaic_0001>

<llo_original>
// kernel: _forward_impl.3
$region0: #{_forward_impl.3}
  #allocation0 [shape = 'u32[]', space=smem, size = 0x4, offset = 0x4, fixed_abs, tag = 'smem constant byte address 0x4 - core index']
  #allocation1 [shape = 'u32[144,128]{1,0:T(1,128)}', space=vmem, size = 0x12000, scoped, tag = 'internal scratch']
  %s0 = inlined_call_operand.vmem [shape: bf16[128,128], index: 0, kind: input, shape index: {}]
  %s1 = inlined_call_operand.vmem [shape: bf16[128,128], index: 1, kind: input, shape index: {}]
  %s2 = inlined_call_operand.vmem [shape: f32[1,128], index: 2, kind: input, shape index: {}]
  %s3 = inlined_call_operand.vmem [shape: bf16[128,128], index: 3, kind: output, shape index: {}]
  %s4 = sld [smem:[#allocation0]]
  $region22: #{_forward_impl.3} parent=0
    _
  %s6 = ssub.s32 1, %s4
  %s7 = scalar_select 0, %s6, %s4
  // Predicated region
  $region2: #{_forward_impl.3} parent=0 // pred_check
    _
  $region3: #{_forward_impl.3} parent=0 // pred_check_branch
    %9 = sbr.rel (0) target = $region5
  $region4: #{_forward_impl.3} parent=0 // pred_region
    _
  $region5: #{_forward_impl.3} parent=0 // pred_fallthru
    _
  // Predicated region
  $region6: #{_forward_impl.3} parent=0 // pred_check
    _
  $region7: #{_forward_impl.3} parent=0 // pred_check_branch
    %11 = sbr.rel (0) target = $region9
  $region8: #{_forward_impl.3} parent=0 // pred_region
    _
  $region9: #{_forward_impl.3} parent=0 // pred_fallthru
    _
  // Predicated region
  $region10: #{_forward_impl.3} parent=0 // pred_check
    _
  $region11: #{_forward_impl.3} parent=0 // pred_check_branch
    %13 = sbr.rel (0) target = $region13
  $region12: #{_forward_impl.3} parent=0 // pred_region
    _
  $region13: #{_forward_impl.3} parent=0 // pred_fallthru
    _
  %v15 = vld [vmem:[%s0] sm:$0xf]
  %v16 = vld [vmem:[%s0 + $0x4] sm:$0xf]
  %v17 = vld [vmem:[%s0 + $0x8] sm:$0xf]
  %v18 = vld [vmem:[%s0 + $0xc] sm:$0xf]
  %v19 = vld [vmem:[%s0 + $0x10] sm:$0xf]
  %v20 = vld [vmem:[%s0 + $0x14] sm:$0xf]
  %v21 = vld [vmem:[%s0 + $0x18] sm:$0xf]
  %v22 = vld [vmem:[%s0 + $0x1c] sm:$0xf]
  %v23 = vld [vmem:[%s0 + $0x20] sm:$0xf]
  %v24 = vld [vmem:[%s0 + $0x24] sm:$0xf]
  %v25 = vld [vmem:[%s0 + $0x28] sm:$0xf]
  %v26 = vld [vmem:[%s0 + $0x2c] sm:$0xf]
  %v27 = vld [vmem:[%s0 + $0x30] sm:$0xf]
  %v28 = vld [vmem:[%s0 + $0x34] sm:$0xf]
  %v29 = vld [vmem:[%s0 + $0x38] sm:$0xf]
  %v30 = vld [vmem:[%s0 + $0x3c] sm:$0xf]
  %v31 = vld [vmem:[%s1] sm:$0xf]
  %v32 = vld [vmem:[%s1 + $0x4] sm:$0xf]
  %v33 = vld [vmem:[%s1 + $0x8] sm:$0xf]
  %v34 = vld [vmem:[%s1 + $0xc] sm:$0xf]
  %v35 = vld [vmem:[%s1 + $0x10] sm:$0xf]
  %v36 = vld [vmem:[%s1 + $0x14] sm:$0xf]
  %v37 = vld [vmem:[%s1 + $0x18] sm:$0xf]
  %v38 = vld [vmem:[%s1 + $0x1c] sm:$0xf]
  %v39 = vld [vmem:[%s1 + $0x20] sm:$0xf]
  %v40 = vld [vmem:[%s1 + $0x24] sm:$0xf]
  %v41 = vld [vmem:[%s1 + $0x28] sm:$0xf]
  %v42 = vld [vmem:[%s1 + $0x2c] sm:$0xf]
  %v43 = vld [vmem:[%s1 + $0x30] sm:$0xf]
  %v44 = vld [vmem:[%s1 + $0x34] sm:$0xf]
  %v45 = vld [vmem:[%s1 + $0x38] sm:$0xf]
  %v46 = vld [vmem:[%s1 + $0x3c] sm:$0xf]
  %v47 = vld [vmem:[%s2] sm:$0x1]
  %v49 = vlaneseq
  %v50 = vshrl.u32 %v49, 7
  %v51 = vsub.s32 0, %v50
  %v52 = vrot.slane %v47, %v51
  %v70 = vunpack.c.l.b16 %v15
  %v71 = vunpack.c.l.b16 %v16
  %v72 = vunpack.c.l.b16 %v17
  %v73 = vunpack.c.l.b16 %v18
  %v74 = vunpack.c.l.b16 %v19
  %v75 = vunpack.c.l.b16 %v20
  %v76 = vunpack.c.l.b16 %v21
  %v77 = vunpack.c.l.b16 %v22
  %v78 = vunpack.c.l.b16 %v23
  %v79 = vunpack.c.l.b16 %v24
  %v80 = vunpack.c.l.b16 %v25
  %v81 = vunpack.c.l.b16 %v26
  %v82 = vunpack.c.l.b16 %v27
  %v83 = vunpack.c.l.b16 %v28
  %v84 = vunpack.c.l.b16 %v29
  %v85 = vunpack.c.l.b16 %v30
  %v86 = vpack.c.b16 %v71, %v70
  %v87 = vpack.c.b16 %v73, %v72
  %v88 = vpack.c.b16 %v75, %v74
  %v89 = vpack.c.b16 %v77, %v76
  %v90 = vpack.c.b16 %v79, %v78
  %v91 = vpack.c.b16 %v81, %v80
  %v92 = vpack.c.b16 %v83, %v82
  %v93 = vpack.c.b16 %v85, %v84
  %v118 = vunpack.c.l.b16 %v31
  %v119 = vunpack.c.l.b16 %v32
  %v120 = vunpack.c.l.b16 %v33
  %v121 = vunpack.c.l.b16 %v34
  %v122 = vunpack.c.l.b16 %v35
  %v123 = vunpack.c.l.b16 %v36
  %v124 = vunpack.c.l.b16 %v37
  %v125 = vunpack.c.l.b16 %v38
  %v126 = vunpack.c.l.b16 %v39
  %v127 = vunpack.c.l.b16 %v40
  %v128 = vunpack.c.l.b16 %v41
  %v129 = vunpack.c.l.b16 %v42
  %v130 = vunpack.c.l.b16 %v43
  %v131 = vunpack.c.l.b16 %v44
  %v132 = vunpack.c.l.b16 %v45
  %v133 = vunpack.c.l.b16 %v46
  %v134 = vpack.c.b16 %v119, %v118
  %v135 = vpack.c.b16 %v121, %v120
  %v136 = vpack.c.b16 %v123, %v122
  %v137 = vpack.c.b16 %v125, %v124
  %v138 = vpack.c.b16 %v127, %v126
  %v139 = vpack.c.b16 %v129, %v128
  %v140 = vpack.c.b16 %v131, %v130
  %v141 = vpack.c.b16 %v133, %v132
  %150 = vmatprep.subr.bf16.mxu0 0
  %151 = vmatpush1.bf16.msra.mxu0 %v141
  %152 = vmatprep.subr.bf16.mxu0 0
  %153 = vmatpush1.bf16.msra.mxu0 %v140
  %154 = vmatprep.subr.bf16.mxu0 0
  %155 = vmatpush1.bf16.msra.mxu0 %v139
  %156 = vmatprep.subr.bf16.mxu0 0
  %157 = vmatpush1.bf16.msra.mxu0 %v138
  %158 = vmatprep.subr.bf16.mxu0 0
  %159 = vmatpush1.bf16.msra.mxu0 %v137
  %160 = vmatprep.subr.bf16.mxu0 0
  %161 = vmatpush1.bf16.msra.mxu0 %v136
  %162 = vmatprep.subr.bf16.mxu0 0
  %163 = vmatpush1.bf16.msra.mxu0 %v135
  %164 = vmatprep.subr.bf16.mxu0 0
  %165 = vmatpush1.bf16.msra.mxu0 %v134
  %166 = vmatprep.subr.bf16.mxu0 0
  %167 = vmatpush2.bf16.msra.mxu0 0
  %168 = vmatprep.subr.bf16.mxu0 0
  %169 = vmatpush2.bf16.msra.mxu0 0
  %170 = vmatprep.subr.bf16.mxu0 0
  %171 = vmatpush2.bf16.msra.mxu0 0
  %172 = vmatprep.subr.bf16.mxu0 0
  %173 = vmatpush2.bf16.msra.mxu0 0
  %174 = vmatprep.subr.bf16.mxu0 0
  %175 = vmatpush2.bf16.msra.mxu0 0
  %176 = vmatprep.subr.bf16.mxu0 0
  %177 = vmatpush2.bf16.msra.mxu0 0
  %178 = vmatprep.subr.bf16.mxu0 0
  %179 = vmatpush2.bf16.msra.mxu0 0
  %180 = vmatprep.subr.bf16.mxu0 0
  %181 = vmatpush2.bf16.msra.mxu0 0
  %182 = vmatprep.mubr.bf16.mxu0 0
  %183 = vmatmul.mubr.bf16.gmra.mxu0 %v86
  %v184 = vpop.f32.mrf.mxu0
  %v185 = vadd.f32 %v52, %v184
  %v186 = vpop.f32.mrf.mxu0
  %v187 = vpop.f32.mrf.mxu0
  %v188 = vadd.f32 %v52, %v187
  %v189 = vpop.f32.mrf.mxu0
  %190 = vmatprep.mubr.bf16.mxu0 0
  %191 = vmatmul.mubr.bf16.gmra.mxu0 %v87
  %v192 = vpop.f32.mrf.mxu0
  %v193 = vadd.f32 %v52, %v192
  %v194 = vpop.f32.mrf.mxu0
  %v195 = vpop.f32.mrf.mxu0
  %v196 = vadd.f32 %v52, %v195
  %v197 = vpop.f32.mrf.mxu0
  %198 = vmatprep.mubr.bf16.mxu0 0
  %199 = vmatmul.mubr.bf16.gmra.mxu0 %v88
  %v200 = vpop.f32.mrf.mxu0
  %v201 = vadd.f32 %v52, %v200
  %v202 = vpop.f32.mrf.mxu0
  %v203 = vpop.f32.mrf.mxu0
  %v204 = vadd.f32 %v52, %v203
  %v205 = vpop.f32.mrf.mxu0
  %206 = vmatprep.mubr.bf16.mxu0 0
  %207 = vmatmul.mubr.bf16.gmra.mxu0 %v89
  %v208 = vpop.f32.mrf.mxu0
  %v209 = vadd.f32 %v52, %v208
  %v210 = vpop.f32.mrf.mxu0
  %v211 = vpop.f32.mrf.mxu0
  %v212 = vadd.f32 %v52, %v211
  %v213 = vpop.f32.mrf.mxu0
  %214 = vmatprep.mubr.bf16.mxu0 0
  %215 = vmatmul.mubr.bf16.gmra.mxu0 %v90
  %v216 = vpop.f32.mrf.mxu0
  %v217 = vadd.f32 %v52, %v216
  %v218 = vpop.f32.mrf.mxu0
  %v219 = vpop.f32.mrf.mxu0
  %v220 = vadd.f32 %v52, %v219
  %v221 = vpop.f32.mrf.mxu0
  %222 = vmatprep.mubr.bf16.mxu0 0
  %223 = vmatmul.mubr.bf16.gmra.mxu0 %v91
  %v224 = vpop.f32.mrf.mxu0
  %v225 = vadd.f32 %v52, %v224
  %v226 = vpop.f32.mrf.mxu0
  %v227 = vpop.f32.mrf.mxu0
  %v228 = vadd.f32 %v52, %v227
  %v229 = vpop.f32.mrf.mxu0
  %230 = vmatprep.mubr.bf16.mxu0 0
  %231 = vmatmul.mubr.bf16.gmra.mxu0 %v92
  %v232 = vpop.f32.mrf.mxu0
  %v233 = vadd.f32 %v52, %v232
  %v234 = vpop.f32.mrf.mxu0
  %v235 = vpop.f32.mrf.mxu0
  %v236 = vadd.f32 %v52, %v235
  %v237 = vpop.f32.mrf.mxu0
  %238 = vmatprep.mubr.bf16.mxu0 0
  %239 = vmatmul.mubr.bf16.gmra.mxu0 %v93
  %v240 = vpop.f32.mrf.mxu0
  %v241 = vadd.f32 %v52, %v240
  %v242 = vpop.f32.mrf.mxu0
  %v243 = vpop.f32.mrf.mxu0
  %v244 = vadd.f32 %v52, %v243
  %v245 = vpop.f32.mrf.mxu0
  %246 = vdwg.mxu0
  %v247 = vmax.f32 %v185, 0.0
  %v248 = vmax.f32 %v188, 0.0
  %v249 = vmax.f32 %v193, 0.0
  %v250 = vmax.f32 %v196, 0.0
  %v251 = vmax.f32 %v201, 0.0
  %v252 = vmax.f32 %v204, 0.0
  %v253 = vmax.f32 %v209, 0.0
  %v254 = vmax.f32 %v212, 0.0
  %v255 = vmax.f32 %v217, 0.0
  %v256 = vmax.f32 %v220, 0.0
  %v257 = vmax.f32 %v225, 0.0
  %v258 = vmax.f32 %v228, 0.0
  %v259 = vmax.f32 %v233, 0.0
  %v260 = vmax.f32 %v236, 0.0
  %v261 = vmax.f32 %v241, 0.0
  %v262 = vmax.f32 %v244, 0.0
  %v263 = vpack.c.bf16 %v248, %v247
  %v264 = vpack.c.bf16 %v250, %v249
  %v265 = vpack.c.bf16 %v252, %v251
  %v266 = vpack.c.bf16 %v254, %v253
  %v267 = vpack.c.bf16 %v256, %v255
  %v268 = vpack.c.bf16 %v258, %v257
  %v269 = vpack.c.bf16 %v260, %v259
  %v270 = vpack.c.bf16 %v262, %v261
  %v279 = vunpack.c.l.b16 %v263
  %v280 = vunpack.c.h.b16 %v263
  %v281 = vunpack.c.l.b16 %v264
  %v282 = vunpack.c.h.b16 %v264
  %v283 = vunpack.c.l.b16 %v265
  %v284 = vunpack.c.h.b16 %v265
  %v285 = vunpack.c.l.b16 %v266
  %v286 = vunpack.c.h.b16 %v266
  %v287 = vunpack.c.l.b16 %v267
  %v288 = vunpack.c.h.b16 %v267
  %v289 = vunpack.c.l.b16 %v268
  %v290 = vunpack.c.h.b16 %v268
  %v291 = vunpack.c.l.b16 %v269
  %v292 = vunpack.c.h.b16 %v269
  %v293 = vunpack.c.l.b16 %v270
  %v294 = vunpack.c.h.b16 %v270
  %v295 = vpack.c.b16 %v279, %v279
  %v296 = vpack.c.b16 %v280, %v280
  %v297 = vpack.c.b16 %v281, %v281
  %v298 = vpack.c.b16 %v282, %v282
  %v299 = vpack.c.b16 %v283, %v283
  %v300 = vpack.c.b16 %v284, %v284
  %v301 = vpack.c.b16 %v285, %v285
  %v302 = vpack.c.b16 %v286, %v286
  %v303 = vpack.c.b16 %v287, %v287
  %v304 = vpack.c.b16 %v288, %v288
  %v305 = vpack.c.b16 %v289, %v289
  %v306 = vpack.c.b16 %v290, %v290
  %v307 = vpack.c.b16 %v291, %v291
  %v308 = vpack.c.b16 %v292, %v292
  %v309 = vpack.c.b16 %v293, %v293
  %v310 = vpack.c.b16 %v294, %v294
  %327 = vst [vmem:[%s3] sm:$0xf] %v295
  %328 = vst [vmem:[%s3 + $0x4] sm:$0xf] %v296
  %329 = vst [vmem:[%s3 + $0x8] sm:$0xf] %v297
  %330 = vst [vmem:[%s3 + $0xc] sm:$0xf] %v298
  %331 = vst [vmem:[%s3 + $0x10] sm:$0xf] %v299
  %332 = vst [vmem:[%s3 + $0x14] sm:$0xf] %v300
  %333 = vst [vmem:[%s3 + $0x18] sm:$0xf] %v301
  %334 = vst [vmem:[%s3 + $0x1c] sm:$0xf] %v302
  %335 = vst [vmem:[%s3 + $0x20] sm:$0xf] %v303
  %336 = vst [vmem:[%s3 + $0x24] sm:$0xf] %v304
  %337 = vst [vmem:[%s3 + $0x28] sm:$0xf] %v305
  %338 = vst [vmem:[%s3 + $0x2c] sm:$0xf] %v306
  %339 = vst [vmem:[%s3 + $0x30] sm:$0xf] %v307
  %340 = vst [vmem:[%s3 + $0x34] sm:$0xf] %v308
  %341 = vst [vmem:[%s3 + $0x38] sm:$0xf] %v309
  %342 = vst [vmem:[%s3 + $0x3c] sm:$0xf] %v310
  // Predicated region
  $region14: #{_forward_impl.3} parent=0 // pred_check
    _
  $region15: #{_forward_impl.3} parent=0 // pred_check_branch
    %344 = sbr.rel (0) target = $region17
  $region16: #{_forward_impl.3} parent=0 // pred_region
    _
  $region17: #{_forward_impl.3} parent=0 // pred_fallthru
    _
  // Predicated region
  $region18: #{_forward_impl.3} parent=0 // pred_check
    _
  $region19: #{_forward_impl.3} parent=0 // pred_check_branch
    %346 = sbr.rel (0) target = $region21
  $region20: #{_forward_impl.3} parent=0 // pred_region
    _
  $region21: #{_forward_impl.3} parent=0 // pred_fallthru
    _

// kernel: _forward_impl.4
$region0: #{_forward_impl.4}
  #allocation0 [shape = 'u32[]', space=smem, size = 0x4, offset = 0x4, fixed_abs, tag = 'smem constant byte address 0x4 - core index']
  #allocation1 [shape = 'u32[144,128]{1,0:T(1,128)}', space=vmem, size = 0x12000, scoped, tag = 'internal scratch']
  %s0 = inlined_call_operand.vmem [shape: bf16[32,256], index: 0, kind: input, shape index: {}]
  %s1 = inlined_call_operand.vmem [shape: bf16[256,128], index: 1, kind: input, shape index: {}]
  %s2 = inlined_call_operand.vmem [shape: f32[1,128], index: 2, kind: input, shape index: {}]
  %s3 = inlined_call_operand.vmem [shape: bf16[32,128], index: 3, kind: output, shape index: {}]
  %s4 = sld [smem:[#allocation0]]
  $region22: #{_forward_impl.4} parent=0
    _
  %s6 = ssub.s32 1, %s4
  %s7 = scalar_select 0, %s6, %s4
  // Predicated region
  $region2: #{_forward_impl.4} parent=0 // pred_check
    _
  $region3: #{_forward_impl.4} parent=0 // pred_check_branch
    %9 = sbr.rel (0) target = $region5
  $region4: #{_forward_impl.4} parent=0 // pred_region
    _
  $region5: #{_forward_impl.4} parent=0 // pred_fallthru
    _
  // Predicated region
  $region6: #{_forward_impl.4} parent=0 // pred_check
    _
  $region7: #{_forward_impl.4} parent=0 // pred_check_branch
    %11 = sbr.rel (0) target = $region9
  $region8: #{_forward_impl.4} parent=0 // pred_region
    _
  $region9: #{_forward_impl.4} parent=0 // pred_fallthru
    _
  // Predicated region
  $region10: #{_forward_impl.4} parent=0 // pred_check
    _
  $region11: #{_forward_impl.4} parent=0 // pred_check_branch
    %13 = sbr.rel (0) target = $region13
  $region12: #{_forward_impl.4} parent=0 // pred_region
    _
  $region13: #{_forward_impl.4} parent=0 // pred_fallthru
    _
  %v15 = vld [vmem:[%s0] sm:$0xff]
  %v16 = vld [vmem:[%s0 + $0x8] sm:$0xff]
  %v17 = vld [vmem:[%s0 + $0x10] sm:$0xff]
  %v18 = vld [vmem:[%s0 + $0x18] sm:$0xff]
  %v19 = vld [vmem:[%s1] sm:$0xf]
  %v20 = vld [vmem:[%s1 + $0x4] sm:$0xf]
  %v21 = vld [vmem:[%s1 + $0x8] sm:$0xf]
  %v22 = vld [vmem:[%s1 + $0xc] sm:$0xf]
  %v23 = vld [vmem:[%s1 + $0x10] sm:$0xf]
  %v24 = vld [vmem:[%s1 + $0x14] sm:$0xf]
  %v25 = vld [vmem:[%s1 + $0x18] sm:$0xf]
  %v26 = vld [vmem:[%s1 + $0x1c] sm:$0xf]
  %v27 = vld [vmem:[%s1 + $0x20] sm:$0xf]
  %v28 = vld [vmem:[%s1 + $0x24] sm:$0xf]
  %v29 = vld [vmem:[%s1 + $0x28] sm:$0xf]
  %v30 = vld [vmem:[%s1 + $0x2c] sm:$0xf]
  %v31 = vld [vmem:[%s1 + $0x30] sm:$0xf]
  %v32 = vld [vmem:[%s1 + $0x34] sm:$0xf]
  %v33 = vld [vmem:[%s1 + $0x38] sm:$0xf]
  %v34 = vld [vmem:[%s1 + $0x3c] sm:$0xf]
  %v35 = vld [vmem:[%s1 + $0x40] sm:$0xf]
  %v36 = vld [vmem:[%s1 + $0x44] sm:$0xf]
  %v37 = vld [vmem:[%s1 + $0x48] sm:$0xf]
  %v38 = vld [vmem:[%s1 + $0x4c] sm:$0xf]
  %v39 = vld [vmem:[%s1 + $0x50] sm:$0xf]
  %v40 = vld [vmem:[%s1 + $0x54] sm:$0xf]
  %v41 = vld [vmem:[%s1 + $0x58] sm:$0xf]
  %v42 = vld [vmem:[%s1 + $0x5c] sm:$0xf]
  %v43 = vld [vmem:[%s1 + $0x60] sm:$0xf]
  %v44 = vld [vmem:[%s1 + $0x64] sm:$0xf]
  %v45 = vld [vmem:[%s1 + $0x68] sm:$0xf]
  %v46 = vld [vmem:[%s1 + $0x6c] sm:$0xf]
  %v47 = vld [vmem:[%s1 + $0x70] sm:$0xf]
  %v48 = vld [vmem:[%s1 + $0x74] sm:$0xf]
  %v49 = vld [vmem:[%s1 + $0x78] sm:$0xf]
  %v50 = vld [vmem:[%s1 + $0x7c] sm:$0xf]
  %v51 = vld [vmem:[%s2] sm:$0x1]
  %v53 = vlaneseq
  %v54 = vshrl.u32 %v53, 7
  %v55 = vsub.s32 0, %v54
  %v56 = vrot.slane %v51, %v55
  %v62 = vunpack.c.l.b16 %v15
  %v63 = vunpack.c.h.b16 %v15
  %v64 = vunpack.c.l.b16 %v16
  %v65 = vunpack.c.h.b16 %v16
  %v66 = vunpack.c.l.b16 %v17
  %v67 = vunpack.c.h.b16 %v17
  %v68 = vunpack.c.l.b16 %v18
  %v69 = vunpack.c.h.b16 %v18
  %v70 = vpack.c.b16 %v64, %v62
  %v71 = vpack.c.b16 %v65, %v63
  %v72 = vpack.c.b16 %v68, %v66
  %v73 = vpack.c.b16 %v69, %v67
  %v110 = vunpack.c.l.b16 %v19
  %v111 = vunpack.c.l.b16 %v20
  %v112 = vunpack.c.l.b16 %v21
  %v113 = vunpack.c.l.b16 %v22
  %v114 = vunpack.c.l.b16 %v23
  %v115 = vunpack.c.l.b16 %v24
  %v116 = vunpack.c.l.b16 %v25
  %v117 = vunpack.c.l.b16 %v26
  %v118 = vunpack.c.l.b16 %v27
  %v119 = vunpack.c.l.b16 %v28
  %v120 = vunpack.c.l.b16 %v29
  %v121 = vunpack.c.l.b16 %v30
  %v122 = vunpack.c.l.b16 %v31
  %v123 = vunpack.c.l.b16 %v32
  %v124 = vunpack.c.l.b16 %v33
  %v125 = vunpack.c.l.b16 %v34
  %v126 = vunpack.c.l.b16 %v35
  %v127 = vunpack.c.l.b16 %v36
  %v128 = vunpack.c.l.b16 %v37
  %v129 = vunpack.c.l.b16 %v38
  %v130 = vunpack.c.l.b16 %v39
  %v131 = vunpack.c.l.b16 %v40
  %v132 = vunpack.c.l.b16 %v41
  %v133 = vunpack.c.l.b16 %v42
  %v134 = vunpack.c.l.b16 %v43
  %v135 = vunpack.c.l.b16 %v44
  %v136 = vunpack.c.l.b16 %v45
  %v137 = vunpack.c.l.b16 %v46
  %v138 = vunpack.c.l.b16 %v47
  %v139 = vunpack.c.l.b16 %v48
  %v140 = vunpack.c.l.b16 %v49
  %v141 = vunpack.c.l.b16 %v50
  %v142 = vpack.c.b16 %v111, %v110
  %v143 = vpack.c.b16 %v113, %v112
  %v144 = vpack.c.b16 %v115, %v114
  %v145 = vpack.c.b16 %v117, %v116
  %v146 = vpack.c.b16 %v119, %v118
  %v147 = vpack.c.b16 %v121, %v120
  %v148 = vpack.c.b16 %v123, %v122
  %v149 = vpack.c.b16 %v125, %v124
  %v150 = vpack.c.b16 %v127, %v126
  %v151 = vpack.c.b16 %v129, %v128
  %v152 = vpack.c.b16 %v131, %v130
  %v153 = vpack.c.b16 %v133, %v132
  %v154 = vpack.c.b16 %v135, %v134
  %v155 = vpack.c.b16 %v137, %v136
  %v156 = vpack.c.b16 %v139, %v138
  %v157 = vpack.c.b16 %v141, %v140
  %174 = vmatprep.subr.bf16.mxu0 0
  %175 = vmatpush1.bf16.msra.mxu0 %v149
  %176 = vmatprep.subr.bf16.mxu0 0
  %177 = vmatpush1.bf16.msra.mxu0 %v148
  %178 = vmatprep.subr.bf16.mxu0 0
  %179 = vmatpush1.bf16.msra.mxu0 %v147
  %180 = vmatprep.subr.bf16.mxu0 0
  %181 = vmatpush1.bf16.msra.mxu0 %v146
  %182 = vmatprep.subr.bf16.mxu0 0
  %183 = vmatpush1.bf16.msra.mxu0 %v145
  %184 = vmatprep.subr.bf16.mxu0 0
  %185 = vmatpush1.bf16.msra.mxu0 %v144
  %186 = vmatprep.subr.bf16.mxu0 0
  %187 = vmatpush1.bf16.msra.mxu0 %v143
  %188 = vmatprep.subr.bf16.mxu0 0
  %189 = vmatpush1.bf16.msra.mxu0 %v142
  %190 = vmatprep.subr.bf16.mxu0 0
  %191 = vmatpush2.bf16.msra.mxu0 %v157
  %192 = vmatprep.subr.bf16.mxu0 0
  %193 = vmatpush2.bf16.msra.mxu0 %v156
  %194 = vmatprep.subr.bf16.mxu0 0
  %195 = vmatpush2.bf16.msra.mxu0 %v155
  %196 = vmatprep.subr.bf16.mxu0 0
  %197 = vmatpush2.bf16.msra.mxu0 %v154
  %198 = vmatprep.subr.bf16.mxu0 0
  %199 = vmatpush2.bf16.msra.mxu0 %v153
  %200 = vmatprep.subr.bf16.mxu0 0
  %201 = vmatpush2.bf16.msra.mxu0 %v152
  %202 = vmatprep.subr.bf16.mxu0 0
  %203 = vmatpush2.bf16.msra.mxu0 %v151
  %204 = vmatprep.subr.bf16.mxu0 0
  %205 = vmatpush2.bf16.msra.mxu0 %v150
  %206 = vmatprep.mubr.bf16.mxu0 %v71
  %207 = vmatmul.mubr.bf16.gmra.mxu0 %v70
  %v208 = vpop.f32.mrf.mxu0
  %v209 = vadd.f32 %v56, %v208
  %v210 = vpop.f32.mrf.mxu0
  %v211 = vpop.f32.mrf.mxu0
  %v212 = vadd.f32 %v56, %v211
  %v213 = vpop.f32.mrf.mxu0
  %214 = vmatprep.mubr.bf16.mxu0 %v73
  %215 = vmatmul.mubr.bf16.gmra.mxu0 %v72
  %v216 = vpop.f32.mrf.mxu0
  %v217 = vadd.f32 %v56, %v216
  %v218 = vpop.f32.mrf.mxu0
  %v219 = vpop.f32.mrf.mxu0
  %v220 = vadd.f32 %v56, %v219
  %v221 = vpop.f32.mrf.mxu0
  %222 = vdwg.mxu0
  %v223 = vmax.f32 %v209, 0.0
  %v224 = vmax.f32 %v212, 0.0
  %v225 = vmax.f32 %v217, 0.0
  %v226 = vmax.f32 %v220, 0.0
  %v227 = vpack.c.bf16 %v224, %v223
  %v228 = vpack.c.bf16 %v226, %v225
  %v231 = vunpack.c.l.b16 %v227
  %v232 = vunpack.c.h.b16 %v227
  %v233 = vunpack.c.l.b16 %v228
  %v234 = vunpack.c.h.b16 %v228
  %v235 = vpack.c.b16 %v231, %v231
  %v236 = vpack.c.b16 %v232, %v232
  %v237 = vpack.c.b16 %v233, %v233
  %v238 = vpack.c.b16 %v234, %v234
  %243 = vst [vmem:[%s3] sm:$0xf] %v235
  %244 = vst [vmem:[%s3 + $0x4] sm:$0xf] %v236
  %245 = vst [vmem:[%s3 + $0x8] sm:$0xf] %v237
  %246 = vst [vmem:[%s3 + $0xc] sm:$0xf] %v238
  // Predicated region
  $region14: #{_forward_impl.4} parent=0 // pred_check
    _
  $region15: #{_forward_impl.4} parent=0 // pred_check_branch
    %248 = sbr.rel (0) target = $region17
  $region16: #{_forward_impl.4} parent=0 // pred_region
    _
  $region17: #{_forward_impl.4} parent=0 // pred_fallthru
    _
  // Predicated region
  $region18: #{_forward_impl.4} parent=0 // pred_check
    _
  $region19: #{_forward_impl.4} parent=0 // pred_check_branch
    %250 = sbr.rel (0) target = $region21
  $region20: #{_forward_impl.4} parent=0 // pred_region
    _
  $region21: #{_forward_impl.4} parent=0 // pred_fallthru
    _

// kernel: _forward_impl.5
$region0: #{_forward_impl.5}
  #allocation0 [shape = 'u32[]', space=smem, size = 0x4, offset = 0x4, fixed_abs, tag = 'smem constant byte address 0x4 - core index']
  #allocation1 [shape = 'u32[144,128]{1,0:T(1,128)}', space=vmem, size = 0x12000, scoped, tag = 'internal scratch']
  %s0 = inlined_call_operand.vmem [shape: bf16[16,384], index: 0, kind: input, shape index: {}]
  %s1 = inlined_call_operand.vmem [shape: bf16[384,128], index: 1, kind: input, shape index: {}]
  %s2 = inlined_call_operand.vmem [shape: f32[1,128], index: 2, kind: input, shape index: {}]
  %s3 = inlined_call_operand.vmem [shape: bf16[16,128], index: 3, kind: output, shape index: {}]
  %s4 = sld [smem:[#allocation0]]
  $region22: #{_forward_impl.5} parent=0
    _
  %s6 = ssub.s32 1, %s4
  %s7 = scalar_select 0, %s6, %s4
  // Predicated region
  $region2: #{_forward_impl.5} parent=0 // pred_check
    _
  $region3: #{_forward_impl.5} parent=0 // pred_check_branch
    %9 = sbr.rel (0) target = $region5
  $region4: #{_forward_impl.5} parent=0 // pred_region
    _
  $region5: #{_forward_impl.5} parent=0 // pred_fallthru
    _
  // Predicated region
  $region6: #{_forward_impl.5} parent=0 // pred_check
    _
  $region7: #{_forward_impl.5} parent=0 // pred_check_branch
    %11 = sbr.rel (0) target = $region9
  $region8: #{_forward_impl.5} parent=0 // pred_region
    _
  $region9: #{_forward_impl.5} parent=0 // pred_fallthru
    _
  // Predicated region
  $region10: #{_forward_impl.5} parent=0 // pred_check
    _
  $region11: #{_forward_impl.5} parent=0 // pred_check_branch
    %13 = sbr.rel (0) target = $region13
  $region12: #{_forward_impl.5} parent=0 // pred_region
    _
  $region13: #{_forward_impl.5} parent=0 // pred_fallthru
    _
  %v15 = vld [vmem:[%s0] sm:$0xff]
  %v16 = vld [vmem:[%s0 + $0x8] sm:$0xf]
  %v17 = vld [vmem:[%s0 + $0xc] sm:$0xff]
  %v18 = vld [vmem:[%s0 + $0x14] sm:$0xf]
  %v19 = vld [vmem:[%s1] sm:$0xf]
  %v20 = vld [vmem:[%s1 + $0x4] sm:$0xf]
  %v21 = vld [vmem:[%s1 + $0x8] sm:$0xf]
  %v22 = vld [vmem:[%s1 + $0xc] sm:$0xf]
  %v23 = vld [vmem:[%s1 + $0x10] sm:$0xf]
  %v24 = vld [vmem:[%s1 + $0x14] sm:$0xf]
  %v25 = vld [vmem:[%s1 + $0x18] sm:$0xf]
  %v26 = vld [vmem:[%s1 + $0x1c] sm:$0xf]
  %v27 = vld [vmem:[%s1 + $0x20] sm:$0xf]
  %v28 = vld [vmem:[%s1 + $0x24] sm:$0xf]
  %v29 = vld [vmem:[%s1 + $0x28] sm:$0xf]
  %v30 = vld [vmem:[%s1 + $0x2c] sm:$0xf]
  %v31 = vld [vmem:[%s1 + $0x30] sm:$0xf]
  %v32 = vld [vmem:[%s1 + $0x34] sm:$0xf]
  %v33 = vld [vmem:[%s1 + $0x38] sm:$0xf]
  %v34 = vld [vmem:[%s1 + $0x3c] sm:$0xf]
  %v35 = vld [vmem:[%s1 + $0x40] sm:$0xf]
  %v36 = vld [vmem:[%s1 + $0x44] sm:$0xf]
  %v37 = vld [vmem:[%s1 + $0x48] sm:$0xf]
  %v38 = vld [vmem:[%s1 + $0x4c] sm:$0xf]
  %v39 = vld [vmem:[%s1 + $0x50] sm:$0xf]
  %v40 = vld [vmem:[%s1 + $0x54] sm:$0xf]
  %v41 = vld [vmem:[%s1 + $0x58] sm:$0xf]
  %v42 = vld [vmem:[%s1 + $0x5c] sm:$0xf]
  %v43 = vld [vmem:[%s1 + $0x60] sm:$0xf]
  %v44 = vld [vmem:[%s1 + $0x64] sm:$0xf]
  %v45 = vld [vmem:[%s1 + $0x68] sm:$0xf]
  %v46 = vld [vmem:[%s1 + $0x6c] sm:$0xf]
  %v47 = vld [vmem:[%s1 + $0x70] sm:$0xf]
  %v48 = vld [vmem:[%s1 + $0x74] sm:$0xf]
  %v49 = vld [vmem:[%s1 + $0x78] sm:$0xf]
  %v50 = vld [vmem:[%s1 + $0x7c] sm:$0xf]
  %v51 = vld [vmem:[%s1 + $0x80] sm:$0xf]
  %v52 = vld [vmem:[%s1 + $0x84] sm:$0xf]
  %v53 = vld [vmem:[%s1 + $0x88] sm:$0xf]
  %v54 = vld [vmem:[%s1 + $0x8c] sm:$0xf]
  %v55 = vld [vmem:[%s1 + $0x90] sm:$0xf]
  %v56 = vld [vmem:[%s1 + $0x94] sm:$0xf]
  %v57 = vld [vmem:[%s1 + $0x98] sm:$0xf]
  %v58 = vld [vmem:[%s1 + $0x9c] sm:$0xf]
  %v59 = vld [vmem:[%s1 + $0xa0] sm:$0xf]
  %v60 = vld [vmem:[%s1 + $0xa4] sm:$0xf]
  %v61 = vld [vmem:[%s1 + $0xa8] sm:$0xf]
  %v62 = vld [vmem:[%s1 + $0xac] sm:$0xf]
  %v63 = vld [vmem:[%s1 + $0xb0] sm:$0xf]
  %v64 = vld [vmem:[%s1 + $0xb4] sm:$0xf]
  %v65 = vld [vmem:[%s1 + $0xb8] sm:$0xf]
  %v66 = vld [vmem:[%s1 + $0xbc] sm:$0xf]
  %v67 = vld [vmem:[%s2] sm:$0x1]
  %v69 = vlaneseq
  %v70 = vshrl.u32 %v69, 7
  %v71 = vsub.s32 0, %v70
  %v72 = vrot.slane %v67, %v71
  %v78 = vunpack.c.l.b16 %v15
  %v79 = vunpack.c.h.b16 %v15
  %v80 = vunpack.c.l.b16 %v16
  %v81 = vunpack.c.l.b16 %v17
  %v82 = vunpack.c.h.b16 %v17
  %v83 = vunpack.c.l.b16 %v18
  %v84 = vpack.c.b16 %v81, %v78
  %v85 = vpack.c.b16 %v82, %v79
  %v86 = vpack.c.b16 %v83, %v80
  %v138 = vunpack.c.l.b16 %v19
  %v139 = vunpack.c.l.b16 %v20
  %v140 = vunpack.c.l.b16 %v21
  %v141 = vunpack.c.l.b16 %v22
  %v142 = vunpack.c.l.b16 %v23
  %v143 = vunpack.c.l.b16 %v24
  %v144 = vunpack.c.l.b16 %v25
  %v145 = vunpack.c.l.b16 %v26
  %v146 = vunpack.c.l.b16 %v27
  %v147 = vunpack.c.l.b16 %v28
  %v148 = vunpack.c.l.b16 %v29
  %v149 = vunpack.c.l.b16 %v30
  %v150 = vunpack.c.l.b16 %v31
  %v151 = vunpack.c.l.b16 %v32
  %v152 = vunpack.c.l.b16 %v33
  %v153 = vunpack.c.l.b16 %v34
  %v154 = vunpack.c.l.b16 %v35
  %v155 = vunpack.c.l.b16 %v36
  %v156 = vunpack.c.l.b16 %v37
  %v157 = vunpack.c.l.b16 %v38
  %v158 = vunpack.c.l.b16 %v39
  %v159 = vunpack.c.l.b16 %v40
  %v160 = vunpack.c.l.b16 %v41
  %v161 = vunpack.c.l.b16 %v42
  %v162 = vunpack.c.l.b16 %v43
  %v163 = vunpack.c.l.b16 %v44
  %v164 = vunpack.c.l.b16 %v45
  %v165 = vunpack.c.l.b16 %v46
  %v166 = vunpack.c.l.b16 %v47
  %v167 = vunpack.c.l.b16 %v48
  %v168 = vunpack.c.l.b16 %v49
  %v169 = vunpack.c.l.b16 %v50
  %v170 = vunpack.c.l.b16 %v51
  %v171 = vunpack.c.l.b16 %v52
  %v172 = vunpack.c.l.b16 %v53
  %v173 = vunpack.c.l.b16 %v54
  %v174 = vunpack.c.l.b16 %v55
  %v175 = vunpack.c.l.b16 %v56
  %v176 = vunpack.c.l.b16 %v57
  %v177 = vunpack.c.l.b16 %v58
  %v178 = vunpack.c.l.b16 %v59
  %v179 = vunpack.c.l.b16 %v60
  %v180 = vunpack.c.l.b16 %v61
  %v181 = vunpack.c.l.b16 %v62
  %v182 = vunpack.c.l.b16 %v63
  %v183 = vunpack.c.l.b16 %v64
  %v184 = vunpack.c.l.b16 %v65
  %v185 = vunpack.c.l.b16 %v66
  %v186 = vpack.c.b16 %v139, %v138
  %v187 = vpack.c.b16 %v141, %v140
  %v188 = vpack.c.b16 %v143, %v142
  %v189 = vpack.c.b16 %v145, %v144
  %v190 = vpack.c.b16 %v147, %v146
  %v191 = vpack.c.b16 %v149, %v148
  %v192 = vpack.c.b16 %v151, %v150
  %v193 = vpack.c.b16 %v153, %v152
  %v194 = vpack.c.b16 %v155, %v154
  %v195 = vpack.c.b16 %v157, %v156
  %v196 = vpack.c.b16 %v159, %v158
  %v197 = vpack.c.b16 %v161, %v160
  %v198 = vpack.c.b16 %v163, %v162
  %v199 = vpack.c.b16 %v165, %v164
  %v200 = vpack.c.b16 %v167, %v166
  %v201 = vpack.c.b16 %v169, %v168
  %v202 = vpack.c.b16 %v171, %v170
  %v203 = vpack.c.b16 %v173, %v172
  %v204 = vpack.c.b16 %v175, %v174
  %v205 = vpack.c.b16 %v177, %v176
  %v206 = vpack.c.b16 %v179, %v178
  %v207 = vpack.c.b16 %v181, %v180
  %v208 = vpack.c.b16 %v183, %v182
  %v209 = vpack.c.b16 %v185, %v184
  %234 = vmatprep.subr.bf16.mxu0 0
  %235 = vmatpush1.bf16.msra.mxu0 %v193
  %236 = vmatprep.subr.bf16.mxu0 0
  %237 = vmatpush1.bf16.msra.mxu0 %v192
  %238 = vmatprep.subr.bf16.mxu0 0
  %239 = vmatpush1.bf16.msra.mxu0 %v191
  %240 = vmatprep.subr.bf16.mxu0 0
  %241 = vmatpush1.bf16.msra.mxu0 %v190
  %242 = vmatprep.subr.bf16.mxu0 0
  %243 = vmatpush1.bf16.msra.mxu0 %v189
  %244 = vmatprep.subr.bf16.mxu0 0
  %245 = vmatpush1.bf16.msra.mxu0 %v188
  %246 = vmatprep.subr.bf16.mxu0 0
  %247 = vmatpush1.bf16.msra.mxu0 %v187
  %248 = vmatprep.subr.bf16.mxu0 0
  %249 = vmatpush1.bf16.msra.mxu0 %v186
  %250 = vmatprep.subr.bf16.mxu0 0
  %251 = vmatpush2.bf16.msra.mxu0 %v201
  %252 = vmatprep.subr.bf16.mxu0 0
  %253 = vmatpush2.bf16.msra.mxu0 %v200
  %254 = vmatprep.subr.bf16.mxu0 0
  %255 = vmatpush2.bf16.msra.mxu0 %v199
  %256 = vmatprep.subr.bf16.mxu0 0
  %257 = vmatpush2.bf16.msra.mxu0 %v198
  %258 = vmatprep.subr.bf16.mxu0 0
  %259 = vmatpush2.bf16.msra.mxu0 %v197
  %260 = vmatprep.subr.bf16.mxu0 0
  %261 = vmatpush2.bf16.msra.mxu0 %v196
  %262 = vmatprep.subr.bf16.mxu0 0
  %263 = vmatpush2.bf16.msra.mxu0 %v195
  %264 = vmatprep.subr.bf16.mxu0 0
  %265 = vmatpush2.bf16.msra.mxu0 %v194
  %266 = vmatprep.mubr.bf16.mxu0 %v85
  %267 = vmatmul.mubr.bf16.gmra.mxu0 %v84
  %v268 = vpop.f32.mrf.mxu0
  %v269 = vadd.f32 %v72, %v268
  %v270 = vpop.f32.mrf.mxu0
  %v271 = vpop.f32.mrf.mxu0
  %v272 = vadd.f32 %v72, %v271
  %v273 = vpop.f32.mrf.mxu0
  %274 = vdwg.mxu0
  %275 = vmatprep.subr.bf16.mxu0 0
  %276 = vmatpush1.bf16.msra.mxu0 %v209
  %277 = vmatprep.subr.bf16.mxu0 0
  %278 = vmatpush1.bf16.msra.mxu0 %v208
  %279 = vmatprep.subr.bf16.mxu0 0
  %280 = vmatpush1.bf16.msra.mxu0 %v207
  %281 = vmatprep.subr.bf16.mxu0 0
  %282 = vmatpush1.bf16.msra.mxu0 %v206
  %283 = vmatprep.subr.bf16.mxu0 0
  %284 = vmatpush1.bf16.msra.mxu0 %v205
  %285 = vmatprep.subr.bf16.mxu0 0
  %286 = vmatpush1.bf16.msra.mxu0 %v204
  %287 = vmatprep.subr.bf16.mxu0 0
  %288 = vmatpush1.bf16.msra.mxu0 %v203
  %289 = vmatprep.subr.bf16.mxu0 0
  %290 = vmatpush1.bf16.msra.mxu0 %v202
  %291 = vmatprep.subr.bf16.mxu0 0
  %292 = vmatpush2.bf16.msra.mxu0 0
  %293 = vmatprep.subr.bf16.mxu0 0
  %294 = vmatpush2.bf16.msra.mxu0 0
  %295 = vmatprep.subr.bf16.mxu0 0
  %296 = vmatpush2.bf16.msra.mxu0 0
  %297 = vmatprep.subr.bf16.mxu0 0
  %298 = vmatpush2.bf16.msra.mxu0 0
  %299 = vmatprep.subr.bf16.mxu0 0
  %300 = vmatpush2.bf16.msra.mxu0 0
  %301 = vmatprep.subr.bf16.mxu0 0
  %302 = vmatpush2.bf16.msra.mxu0 0
  %303 = vmatprep.subr.bf16.mxu0 0
  %304 = vmatpush2.bf16.msra.mxu0 0
  %305 = vmatprep.subr.bf16.mxu0 0
  %306 = vmatpush2.bf16.msra.mxu0 0
  %307 = vmatprep.mubr.bf16.mxu0 0
  %308 = vmatmul.mubr.bf16.gmra.mxu0 %v86
  %v309 = vpop.f32.mrf.mxu0
  %v310 = vadd.f32 %v269, %v309
  %v311 = vpop.f32.mrf.mxu0
  %v312 = vpop.f32.mrf.mxu0
  %v313 = vadd.f32 %v272, %v312
  %v314 = vpop.f32.mrf.mxu0
  %315 = vdwg.mxu0
  %v316 = vmax.f32 %v310, 0.0
  %v317 = vmax.f32 %v313, 0.0
  %v318 = vpack.c.bf16 %v317, %v316
  %v320 = vunpack.c.l.b16 %v318
  %v321 = vunpack.c.h.b16 %v318
  %v322 = vpack.c.b16 %v320, %v320
  %v323 = vpack.c.b16 %v321, %v321
  %326 = vst [vmem:[%s3] sm:$0xf] %v322
  %327 = vst [vmem:[%s3 + $0x4] sm:$0xf] %v323
  // Predicated region
  $region14: #{_forward_impl.5} parent=0 // pred_check
    _
  $region15: #{_forward_impl.5} parent=0 // pred_check_branch
    %329 = sbr.rel (0) target = $region17
  $region16: #{_forward_impl.5} parent=0 // pred_region
    _
  $region17: #{_forward_impl.5} parent=0 // pred_fallthru
    _
  // Predicated region
  $region18: #{_forward_impl.5} parent=0 // pred_check
    _
  $region19: #{_forward_impl.5} parent=0 // pred_check_branch
    %331 = sbr.rel (0) target = $region21
  $region20: #{_forward_impl.5} parent=0 // pred_region
    _
  $region21: #{_forward_impl.5} parent=0 // pred_fallthru
    _

</llo_original>
